<compile_context>
chip_gen: v7x
topology: tpu7x:2x2x1
jax: 0.10.0
libtpu: 0.0.40
codegen_flags: <defaults>
</compile_context>

<pallas_src>
import functools

import jax
import jax.numpy as jnp
from jax.experimental import pallas as pl
from jax.experimental.pallas import tpu as pltpu


# ---------------------------------------------------------------------------
# Kernel
# ---------------------------------------------------------------------------
def _mlp_bottle_kernel(x_ref,
                       w1_ref, b1_ref,      # fused [lin1a | skip]: IN -> 2*BN_PAD
                       w1b_ref, b1b_ref,    # lin1b: BN_PAD -> BN_PAD
                       w2a_ref, b2a_ref,    # lin2a: BN_PAD -> BN_PAD
                       w2b_ref, b2b_ref,    # lin2b: BN_PAD -> OUT_PAD
                       o_ref, *, bn_pad):
    x = x_ref[...]

    # Fused first-layer + skip matmul (one MXU push for both x-consumers).
    hs = jnp.dot(x, w1_ref[...], preferred_element_type=jnp.float32) + b1_ref[...]
    h = jnp.maximum(hs[:, :bn_pad], 0.0)      # linear1[0] -> ReLU  (lane-aligned split)
    skip = hs[:, bn_pad:]                     # skip path (no activation)

    # linear1[2]
    h = jnp.dot(h, w1b_ref[...], preferred_element_type=jnp.float32) + b1b_ref[...]

    # act(linear1(x) + skip(x))
    z = jnp.maximum(h + skip, 0.0)

    # linear2: Linear -> ReLU -> Linear
    z = jnp.maximum(
        jnp.dot(z, w2a_ref[...], preferred_element_type=jnp.float32) + b2a_ref[...],
        0.0)
    out = jnp.dot(z, w2b_ref[...], preferred_element_type=jnp.float32) + b2b_ref[...]

    o_ref[...] = out.astype(o_ref.dtype)


# ---------------------------------------------------------------------------
# One-time parameter preparation (outside the hot path)
# ---------------------------------------------------------------------------
def _wn_effective(v, g):
    # PyTorch weight_norm: W[o,:] = g[o] * v[o,:] / ||v[o,:]||_2
    # (no epsilon, matching PyTorch; an all-zero v row would NaN there too).
    norm = jnp.sqrt(jnp.sum(v * v, axis=1, keepdims=True))
    return g[:, None] * v / norm              # [out, in]


def _round_up(n, m):
    return -(-n // m) * m


def prepare_params(params):
    """Run ONCE: resolve weight norm into effective weights, transpose to
    [in, out], zero-pad bottleneck/output widths to 128 lanes, and fuse the
    two x-consuming layers (lin1a | skip) into a single [IN, 2*BN_PAD] matmul."""
    def wt(name):
        v, g, b = params[name]
        return _wn_effective(v, g).T, b[None, :]      # [in, out], [1, out]

    w1a, b1a = wt("lin1a")
    wsk, bsk = wt("skip")
    w1b, b1b = wt("lin1b")
    w2a, b2a = wt("lin2a")
    w2b, b2b = wt("lin2b")

    in_len = w1a.shape[0]
    bn = w1b.shape[1]
    out = w2b.shape[1]
    bn_pad = _round_up(bn, 128)
    out_pad = _round_up(out, 128)

    def pad_w(w, rows, cols):
        return jnp.pad(w, ((0, rows - w.shape[0]), (0, cols - w.shape[1])))

    def pad_b(b, cols):
        return jnp.pad(b, ((0, 0), (0, cols - b.shape[1])))

    # Zero-padded columns stay 0 through every layer (zero weights + zero bias
    # + ReLU), so numerics are unchanged and the final slice removes them.
    w1a = pad_w(w1a, in_len, bn_pad)
    wsk = pad_w(wsk, in_len, bn_pad)
    b1a = pad_b(b1a, bn_pad)
    bsk = pad_b(bsk, bn_pad)
    w1 = jnp.concatenate([w1a, wsk], axis=1)          # [IN, 2*BN_PAD]
    b1 = jnp.concatenate([b1a, bsk], axis=1)          # [1, 2*BN_PAD]

    w1b = pad_w(w1b, bn_pad, bn_pad)
    b1b = pad_b(b1b, bn_pad)
    w2a = pad_w(w2a, bn_pad, bn_pad)
    b2a = pad_b(b2a, bn_pad)
    w2b = pad_w(w2b, bn_pad, out_pad)
    b2b = pad_b(b2b, out_pad)

    weights = (w1, b1, w1b, b1b, w2a, b2a, w2b, b2b)
    meta = dict(bn_pad=bn_pad, out=out, out_pad=out_pad, in_len=in_len)
    return weights, meta


# ---------------------------------------------------------------------------
# Forward
# ---------------------------------------------------------------------------
_MAX_BLOCK_M = 2048        # per-tile row cap (keeps double-buffered VMEM small)
_SINGLE_STEP_MAX = 256     # below this: one grid step (latency-bound regime)


def _choose_block_m(B):
    if B <= _SINGLE_STEP_MAX:
        return _round_up(B, 8)                 # sublane-aligned single tile
    # >= 2 grid steps so the 'parallel' batch axis can shard across both
    # TensorCores on a megacore part (v7x), capped for VMEM.
    half = -(-B // 2)
    return min(_MAX_BLOCK_M, _round_up(half, 8))


def mlp_bottle_forward(x, weights, meta):
    """x: [batch, input_len] float32. Returns [batch, output_len]."""
    B, IN = x.shape
    assert IN == meta["in_len"]
    bn_pad, out, out_pad = meta["bn_pad"], meta["out"], meta["out_pad"]

    block_m = _choose_block_m(B)
    b_pad = _round_up(B, block_m)
    if b_pad != B:
        # Only hit when the batch is not already a tile multiple.
        x = jnp.pad(x, ((0, b_pad - B), (0, 0)))
    n_steps = b_pad // block_m

    (w1, b1, w1b, b1b, w2a, b2a, w2b, b2b) = weights

    def full(a):
        return pl.BlockSpec(a.shape, lambda i: (0, 0))

    in_specs = [
        pl.BlockSpec((block_m, IN), lambda i: (i, 0)),   # x: tiled over batch
        full(w1), full(b1),                              # fused lin1a | skip
        full(w1b), full(b1b),                            # lin1b
        full(w2a), full(b2a),                            # lin2a
        full(w2b), full(b2b),                            # lin2b (lane-padded)
    ]
    out_specs = pl.BlockSpec((block_m, out_pad), lambda i: (i, 0))

    y = pl.pallas_call(
        functools.partial(_mlp_bottle_kernel, bn_pad=bn_pad),
        out_shape=jax.ShapeDtypeStruct((b_pad, out_pad), x.dtype),
        grid_spec=pltpu.PrefetchScalarGridSpec(
            num_scalar_prefetch=0,
            grid=(n_steps,),
            in_specs=in_specs,
            out_specs=out_specs,
        ),
        compiler_params=pltpu.CompilerParams(
            dimension_semantics=(
                ("parallel",) if n_steps > 1 else ("arbitrary",)),
            vmem_limit_bytes=32 * 1024 * 1024,
        ),
    )(x, w1, b1, w1b, b1b, w2a, b2a, w2b, b2b)

    return y[:B, :out]


# ---------------------------------------------------------------------------
# Pure-JAX reference (mirrors the PyTorch forward exactly)
# ---------------------------------------------------------------------------
def mlp_bottle_reference(x, params):
    def lin(name, h):
        v, g, b = params[name]
        norm = jnp.sqrt(jnp.sum(v * v, axis=1, keepdims=True))
        w = g[:, None] * v / norm                     # [out, in]
        return h @ w.T + b

    h = jax.nn.relu(lin("lin1a", x))
    h = lin("lin1b", h)
    s = lin("skip", x)
    z = jax.nn.relu(h + s)
    z = jax.nn.relu(lin("lin2a", z))
    return lin("lin2b", z)


def init_params(key, input_len, output_len, bottleneck):
    """Deterministic synthetic init (v, g, b) per weight-normalized Linear."""
    shapes = {
        "lin1a": (bottleneck, input_len),
        "lin1b": (bottleneck, bottleneck),
        "skip":  (bottleneck, input_len),
        "lin2a": (bottleneck, bottleneck),
        "lin2b": (output_len, bottleneck),
    }
    params = {}
    for name, (out_f, in_f) in shapes.items():
        key, kv, kg, kb = jax.random.split(key, 4)
        bound = 1.0 / jnp.sqrt(in_f)
        v = jax.random.uniform(kv, (out_f, in_f), jnp.float32, -bound, bound)
        g = jax.random.uniform(kg, (out_f,), jnp.float32, 0.5, 1.5)
        b = jax.random.uniform(kb, (out_f,), jnp.float32, -bound, bound)
        params[name] = (v, g, b)
    return params


if __name__ == "__main__":
    key = jax.random.PRNGKey(0)

    batch, input_len, output_len, bottleneck = 16, 24, 12, 32

    k_x, k_p = jax.random.split(key)
    x = jax.random.normal(k_x, (batch, input_len), jnp.float32)
    params = init_params(k_p, input_len, output_len, bottleneck)

    # One-time weight-norm resolution / layout prep (outside the hot path).
    weights, meta = prepare_params(params)
    weights = jax.block_until_ready(weights)

    out = mlp_bottle_forward(x, weights, meta)
    out = jax.block_until_ready(out)

    ref = mlp_bottle_reference(x, params)
    assert out.shape == (batch, output_len)
    assert jnp.allclose(out, ref, atol=1e-4, rtol=1e-4), (
        f"max abs err = {jnp.max(jnp.abs(out - ref))}")

    print("KERNEL_OK")
</pallas_src>

<mosaic_0001>
module attributes {stable_mosaic.version = 11 : i64} {
  func.func @_mlp_bottle_kernel(%arg0: i32, %arg1: memref<16x24xf32, #tpu.memory_space<vmem>>, %arg2: memref<24x256xf32, #tpu.memory_space<vmem>>, %arg3: memref<1x256xf32, #tpu.memory_space<vmem>>, %arg4: memref<128x128xf32, #tpu.memory_space<vmem>>, %arg5: memref<1x128xf32, #tpu.memory_space<vmem>>, %arg6: memref<128x128xf32, #tpu.memory_space<vmem>>, %arg7: memref<1x128xf32, #tpu.memory_space<vmem>>, %arg8: memref<128x128xf32, #tpu.memory_space<vmem>>, %arg9: memref<1x128xf32, #tpu.memory_space<vmem>>, %arg10: memref<16x128xf32, #tpu.memory_space<vmem>>) attributes {dimension_semantics = [#tpu.dimension_semantics<arbitrary>], iteration_bounds = array<i64: 1>, scalar_prefetch = 0 : i64, scratch_operands = 0 : i64, tpu.core_type = #tpu.core_type<tc>, window_params = [{transform_indices = @transform_0, window_bounds = array<i64: 16, 24>}, {pipeline_mode = #tpu.pipeline_mode<synchronous>, transform_indices = @transform_1, window_bounds = array<i64: 24, 256>}, {pipeline_mode = #tpu.pipeline_mode<synchronous>, transform_indices = @transform_2, window_bounds = array<i64: 1, 256>}, {pipeline_mode = #tpu.pipeline_mode<synchronous>, transform_indices = @transform_3, window_bounds = array<i64: 128, 128>}, {pipeline_mode = #tpu.pipeline_mode<synchronous>, transform_indices = @transform_4, window_bounds = array<i64: 1, 128>}, {pipeline_mode = #tpu.pipeline_mode<synchronous>, transform_indices = @transform_5, window_bounds = array<i64: 128, 128>}, {pipeline_mode = #tpu.pipeline_mode<synchronous>, transform_indices = @transform_6, window_bounds = array<i64: 1, 128>}, {pipeline_mode = #tpu.pipeline_mode<synchronous>, transform_indices = @transform_7, window_bounds = array<i64: 128, 128>}, {pipeline_mode = #tpu.pipeline_mode<synchronous>, transform_indices = @transform_8, window_bounds = array<i64: 1, 128>}, {transform_indices = @transform_9, window_bounds = array<i64: 16, 128>}]} {
    %c0 = arith.constant 0 : index
    %c0_0 = arith.constant 0 : index
    %0 = vector.load %arg1[%c0, %c0_0] : memref<16x24xf32, #tpu.memory_space<vmem>>, vector<16x24xf32>
    %c0_1 = arith.constant 0 : index
    %c0_2 = arith.constant 0 : index
    %1 = vector.load %arg2[%c0_1, %c0_2] : memref<24x256xf32, #tpu.memory_space<vmem>>, vector<24x256xf32>
    %cst = arith.constant dense<0.000000e+00> : vector<16x256xf32>
    %2 = tpu.matmul %0, %1, %cst {dimension_numbers = #tpu.dot_dimension_numbers<[1], [0], [0], [1], [0, 0, 1, 1], [], []>} : vector<16x24xf32>, vector<24x256xf32>, vector<16x256xf32> -> vector<16x256xf32>
    %c0_3 = arith.constant 0 : index
    %c0_4 = arith.constant 0 : index
    %3 = vector.load %arg3[%c0_3, %c0_4] : memref<1x256xf32, #tpu.memory_space<vmem>>, vector<1x256xf32>
    %4 = vector.broadcast %3 : vector<1x256xf32> to vector<16x256xf32>
    %5 = arith.addf %2, %4 : vector<16x256xf32>
    %6 = vector.extract_strided_slice %5 {offsets = [0, 0], sizes = [16, 128], strides = [1, 1]} : vector<16x256xf32> to vector<16x128xf32>
    %cst_5 = arith.constant 0.000000e+00 : f32
    %7 = vector.broadcast %cst_5 : f32 to vector<16x128xf32>
    %8 = arith.maximumf %6, %7 : vector<16x128xf32>
    %9 = vector.extract_strided_slice %5 {offsets = [0, 128], sizes = [16, 128], strides = [1, 1]} : vector<16x256xf32> to vector<16x128xf32>
    %c0_6 = arith.constant 0 : index
    %c0_7 = arith.constant 0 : index
    %10 = vector.load %arg4[%c0_6, %c0_7] : memref<128x128xf32, #tpu.memory_space<vmem>>, vector<128x128xf32>
    %cst_8 = arith.constant dense<0.000000e+00> : vector<16x128xf32>
    %11 = tpu.matmul %8, %10, %cst_8 {dimension_numbers = #tpu.dot_dimension_numbers<[1], [0], [0], [1], [0, 0, 1, 1], [], []>} : vector<16x128xf32>, vector<128x128xf32>, vector<16x128xf32> -> vector<16x128xf32>
    %c0_9 = arith.constant 0 : index
    %c0_10 = arith.constant 0 : index
    %12 = vector.load %arg5[%c0_9, %c0_10] : memref<1x128xf32, #tpu.memory_space<vmem>>, vector<1x128xf32>
    %13 = vector.broadcast %12 : vector<1x128xf32> to vector<16x128xf32>
    %14 = arith.addf %11, %13 : vector<16x128xf32>
    %15 = arith.addf %14, %9 : vector<16x128xf32>
    %cst_11 = arith.constant 0.000000e+00 : f32
    %16 = vector.broadcast %cst_11 : f32 to vector<16x128xf32>
    %17 = arith.maximumf %15, %16 : vector<16x128xf32>
    %c0_12 = arith.constant 0 : index
    %c0_13 = arith.constant 0 : index
    %18 = vector.load %arg6[%c0_12, %c0_13] : memref<128x128xf32, #tpu.memory_space<vmem>>, vector<128x128xf32>
    %cst_14 = arith.constant dense<0.000000e+00> : vector<16x128xf32>
    %19 = tpu.matmul %17, %18, %cst_14 {dimension_numbers = #tpu.dot_dimension_numbers<[1], [0], [0], [1], [0, 0, 1, 1], [], []>} : vector<16x128xf32>, vector<128x128xf32>, vector<16x128xf32> -> vector<16x128xf32>
    %c0_15 = arith.constant 0 : index
    %c0_16 = arith.constant 0 : index
    %20 = vector.load %arg7[%c0_15, %c0_16] : memref<1x128xf32, #tpu.memory_space<vmem>>, vector<1x128xf32>
    %21 = vector.broadcast %20 : vector<1x128xf32> to vector<16x128xf32>
    %22 = arith.addf %19, %21 : vector<16x128xf32>
    %cst_17 = arith.constant 0.000000e+00 : f32
    %23 = vector.broadcast %cst_17 : f32 to vector<16x128xf32>
    %24 = arith.maximumf %22, %23 : vector<16x128xf32>
    %c0_18 = arith.constant 0 : index
    %c0_19 = arith.constant 0 : index
    %25 = vector.load %arg8[%c0_18, %c0_19] : memref<128x128xf32, #tpu.memory_space<vmem>>, vector<128x128xf32>
    %cst_20 = arith.constant dense<0.000000e+00> : vector<16x128xf32>
    %26 = tpu.matmul %24, %25, %cst_20 {dimension_numbers = #tpu.dot_dimension_numbers<[1], [0], [0], [1], [0, 0, 1, 1], [], []>} : vector<16x128xf32>, vector<128x128xf32>, vector<16x128xf32> -> vector<16x128xf32>
    %c0_21 = arith.constant 0 : index
    %c0_22 = arith.constant 0 : index
    %27 = vector.load %arg9[%c0_21, %c0_22] : memref<1x128xf32, #tpu.memory_space<vmem>>, vector<1x128xf32>
    %28 = vector.broadcast %27 : vector<1x128xf32> to vector<16x128xf32>
    %29 = arith.addf %26, %28 : vector<16x128xf32>
    %c0_23 = arith.constant 0 : index
    %c0_24 = arith.constant 0 : index
    %30 = vector.load %arg10[%c0_23, %c0_24] : memref<16x128xf32, #tpu.memory_space<vmem>>, vector<16x128xf32>
    tpu.vector_store %arg10[%c0_23, %c0_24], %29 {strides = array<i32>} : memref<16x128xf32, #tpu.memory_space<vmem>>, vector<16x128xf32>,
    return
  }
  func.func @transform_0(%arg0: i32) -> (i32, i32) {
    %c0_i32 = arith.constant 0 : i32
    %c0_i32_0 = arith.constant 0 : i32
    return %arg0, %c0_i32 : i32, i32
  }
  func.func @transform_1(%arg0: i32) -> (i32, i32) {
    %c0_i32 = arith.constant 0 : i32
    %c0_i32_0 = arith.constant 0 : i32
    %c0_i32_1 = arith.constant 0 : i32
    return %c0_i32, %c0_i32_0 : i32, i32
  }
  func.func @transform_2(%arg0: i32) -> (i32, i32) {
    %c0_i32 = arith.constant 0 : i32
    %c0_i32_0 = arith.constant 0 : i32
    %c0_i32_1 = arith.constant 0 : i32
    return %c0_i32, %c0_i32_0 : i32, i32
  }
  func.func @transform_3(%arg0: i32) -> (i32, i32) {
    %c0_i32 = arith.constant 0 : i32
    %c0_i32_0 = arith.constant 0 : i32
    %c0_i32_1 = arith.constant 0 : i32
    return %c0_i32, %c0_i32_0 : i32, i32
  }
  func.func @transform_4(%arg0: i32) -> (i32, i32) {
    %c0_i32 = arith.constant 0 : i32
    %c0_i32_0 = arith.constant 0 : i32
    %c0_i32_1 = arith.constant 0 : i32
    return %c0_i32, %c0_i32_0 : i32, i32
  }
  func.func @transform_5(%arg0: i32) -> (i32, i32) {
    %c0_i32 = arith.constant 0 : i32
    %c0_i32_0 = arith.constant 0 : i32
    %c0_i32_1 = arith.constant 0 : i32
    return %c0_i32, %c0_i32_0 : i32, i32
  }
  func.func @transform_6(%arg0: i32) -> (i32, i32) {
    %c0_i32 = arith.constant 0 : i32
    %c0_i32_0 = arith.constant 0 : i32
    %c0_i32_1 = arith.constant 0 : i32
    return %c0_i32, %c0_i32_0 : i32, i32
  }
  func.func @transform_7(%arg0: i32) -> (i32, i32) {
    %c0_i32 = arith.constant 0 : i32
    %c0_i32_0 = arith.constant 0 : i32
    %c0_i32_1 = arith.constant 0 : i32
    return %c0_i32, %c0_i32_0 : i32, i32
  }
  func.func @transform_8(%arg0: i32) -> (i32, i32) {
    %c0_i32 = arith.constant 0 : i32
    %c0_i32_0 = arith.constant 0 : i32
    %c0_i32_1 = arith.constant 0 : i32
    return %c0_i32, %c0_i32_0 : i32, i32
  }
  func.func @transform_9(%arg0: i32) -> (i32, i32) {
    %c0_i32 = arith.constant 0 : i32
    %c0_i32_0 = arith.constant 0 : i32
    return %arg0, %c0_i32 : i32, i32
  }
}

</mosaic_0001>

<llo_original>
// kernel: tpu_custom_call.1
$region0: #{tpu_custom_call.1}
  #allocation0 [shape = 'u32[]', space=smem, size = 0x4, offset = 0x4, fixed_abs, tag = 'smem constant byte address 0x4 - core index']
  #allocation1 [shape = 'u32[144,128]{1,0:T(1,128)}', space=vmem, size = 0x12000, scoped, tag = 'internal scratch']
  %s0 = inlined_call_operand.hbm [shape: f32[16,24], index: 0, kind: input, shape index: {}]
  %s1 = inlined_call_operand.hbm [shape: f32[24,256], index: 1, kind: input, shape index: {}]
  %s2 = inlined_call_operand.vmem [shape: f32[1,256], index: 2, kind: input, shape index: {}]
  %s3 = inlined_call_operand.hbm [shape: f32[128,128], index: 3, kind: input, shape index: {}]
  %s4 = inlined_call_operand.vmem [shape: f32[1,128], index: 4, kind: input, shape index: {}]
  %s5 = inlined_call_operand.hbm [shape: f32[128,128], index: 5, kind: input, shape index: {}]
  %s6 = inlined_call_operand.vmem [shape: f32[1,128], index: 6, kind: input, shape index: {}]
  %s7 = inlined_call_operand.hbm [shape: f32[128,128], index: 7, kind: input, shape index: {}]
  %s8 = inlined_call_operand.vmem [shape: f32[1,128], index: 8, kind: input, shape index: {}]
  %s9 = inlined_call_operand.hbm [shape: f32[16,128], index: 9, kind: output, shape index: {}]
  %s10 = sld [smem:[#allocation0]]
  $region66: #{tpu_custom_call.1} parent=0
    _
  %s12 = ssub.s32 1, %s10
  %s13 = scalar_select 0, %s12, %s10
  $region1: #{tpu_custom_call.1} parent=0
    #allocation2 [shape = 'u8[8192]{0}', space=vmem, size = 0x2000, scoped, tag = 'input window, operand 0, single buffered']
    #allocation3 [shape = 's32[1]{0}', space=sflag, size = 0x4, scoped, tag = 'scoped memory for tpu_custom_call.1']
    #allocation4 [shape = 's32[1]{0}', space=sflag, size = 0x4, scoped, tag = 'scoped memory for tpu_custom_call.1']
    #allocation5 [shape = 'u8[24576]{0}', space=vmem, size = 0x6000, scoped, tag = 'input window, operand 1, single buffered']
    #allocation6 [shape = 's32[1]{0}', space=sflag, size = 0x4, scoped, tag = 'scoped memory for tpu_custom_call.1']
    #allocation7 [shape = 'u8[65536]{0}', space=vmem, size = 0x10000, scoped, tag = 'input window, operand 3, single buffered']
    #allocation8 [shape = 'u8[65536]{0}', space=vmem, size = 0x10000, scoped, tag = 'input window, operand 5, single buffered']
    #allocation9 [shape = 's32[1]{0}', space=sflag, size = 0x4, scoped, tag = 'scoped memory for tpu_custom_call.1']
    #allocation10 [shape = 'u8[65536]{0}', space=vmem, size = 0x10000, scoped, tag = 'input window, operand 7, single buffered']
    #allocation11 [shape = 'u8[8192]{0}', space=vmem, size = 0x2000, scoped, tag = 'output window, operand 0, single buffered']
    %14 = vsyncpa [#allocation3], 0
    %15 = vsyncpa [#allocation6], 0
    %16 = vsyncpa [#allocation9], 0
    %17 = vsyncpa [#allocation4], 0
    // Predicated region
    $region2: #{tpu_custom_call.1} parent=1 // pred_check
      _
    $region3: #{tpu_custom_call.1} parent=1 // pred_check_branch
      %19 = sbr.rel (0) target = $region5
    $region4: #{tpu_custom_call.1} parent=1 // pred_region
      %s21 = ssub.s32 256, 256
      %22 = vsyncadd [#allocation3], %s21
      %s23 = sshll.u32 [#allocation2], 4
      %s24 = int_to_ptr.vmem [resolvable:$true] %s23
      %29 = dma.hbm_to_vmem [thread:$0]  %s0, 256, %s24, [#allocation3], 128, 128, 8
    $region5: #{tpu_custom_call.1} parent=1 // pred_fallthru
      _
    // Predicated region
    $region6: #{tpu_custom_call.1} parent=1 // pred_check
      _
    $region7: #{tpu_custom_call.1} parent=1 // pred_check_branch
      %31 = sbr.rel (0) target = $region9
    $region8: #{tpu_custom_call.1} parent=1 // pred_region
      %s33 = ssub.s32 768, 768
      %34 = vsyncadd [#allocation6], %s33
      %s35 = sshll.u32 [#allocation5], 4
      %s36 = int_to_ptr.vmem [resolvable:$true] %s35
      %41 = dma.hbm_to_vmem [thread:$0]  %s1, 768, %s36, [#allocation6], 256, 256, 16
    $region9: #{tpu_custom_call.1} parent=1 // pred_fallthru
      _
    // Predicated region
    $region10: #{tpu_custom_call.1} parent=1 // pred_check
      _
    $region11: #{tpu_custom_call.1} parent=1 // pred_check_branch
      %43 = sbr.rel (0) target = $region13
    $region12: #{tpu_custom_call.1} parent=1 // pred_region
      _
    $region13: #{tpu_custom_call.1} parent=1 // pred_fallthru
      _
    // Predicated region
    $region14: #{tpu_custom_call.1} parent=1 // pred_check
      _
    $region15: #{tpu_custom_call.1} parent=1 // pred_check_branch
      %45 = sbr.rel (0) target = $region17
    $region16: #{tpu_custom_call.1} parent=1 // pred_region
      %s47 = ssub.s32 2048, 2048
      %48 = vsyncadd [#allocation6], %s47
      %s49 = sshll.u32 [#allocation7], 4
      %s50 = int_to_ptr.vmem [resolvable:$true] %s49
      %55 = dma.hbm_to_vmem [thread:$0]  %s3, 2048, %s50, [#allocation6], 128, 128, 8
    $region17: #{tpu_custom_call.1} parent=1 // pred_fallthru
      _
    // Predicated region
    $region18: #{tpu_custom_call.1} parent=1 // pred_check
      _
    $region19: #{tpu_custom_call.1} parent=1 // pred_check_branch
      %57 = sbr.rel (0) target = $region21
    $region20: #{tpu_custom_call.1} parent=1 // pred_region
      _
    $region21: #{tpu_custom_call.1} parent=1 // pred_fallthru
      _
    // Predicated region
    $region22: #{tpu_custom_call.1} parent=1 // pred_check
      _
    $region23: #{tpu_custom_call.1} parent=1 // pred_check_branch
      %59 = sbr.rel (0) target = $region25
    $region24: #{tpu_custom_call.1} parent=1 // pred_region
      %s61 = ssub.s32 2048, 2048
      %62 = vsyncadd [#allocation9], %s61
      %s63 = sshll.u32 [#allocation8], 4
      %s64 = int_to_ptr.vmem [resolvable:$true] %s63
      %69 = dma.hbm_to_vmem [thread:$0]  %s5, 2048, %s64, [#allocation9], 128, 128, 8
    $region25: #{tpu_custom_call.1} parent=1 // pred_fallthru
      _
    // Predicated region
    $region26: #{tpu_custom_call.1} parent=1 // pred_check
      _
    $region27: #{tpu_custom_call.1} parent=1 // pred_check_branch
      %71 = sbr.rel (0) target = $region29
    $region28: #{tpu_custom_call.1} parent=1 // pred_region
      _
    $region29: #{tpu_custom_call.1} parent=1 // pred_fallthru
      _
    // Predicated region
    $region30: #{tpu_custom_call.1} parent=1 // pred_check
      _
    $region31: #{tpu_custom_call.1} parent=1 // pred_check_branch
      %73 = sbr.rel (0) target = $region33
    $region32: #{tpu_custom_call.1} parent=1 // pred_region
      %s75 = ssub.s32 2048, 2048
      %76 = vsyncadd [#allocation9], %s75
      %s77 = sshll.u32 [#allocation10], 4
      %s78 = int_to_ptr.vmem [resolvable:$true] %s77
      %83 = dma.hbm_to_vmem [thread:$0]  %s7, 2048, %s78, [#allocation9], 128, 128, 8
    $region33: #{tpu_custom_call.1} parent=1 // pred_fallthru
      _
    // Predicated region
    $region34: #{tpu_custom_call.1} parent=1 // pred_check
      _
    $region35: #{tpu_custom_call.1} parent=1 // pred_check_branch
      %85 = sbr.rel (0) target = $region37
    $region36: #{tpu_custom_call.1} parent=1 // pred_region
      _
    $region37: #{tpu_custom_call.1} parent=1 // pred_fallthru
      _
    // Predicated region
    $region38: #{tpu_custom_call.1} parent=1 // pred_check
      _
    $region39: #{tpu_custom_call.1} parent=1 // pred_check_branch
      %87 = sbr.rel (0) target = $region41
    $region40: #{tpu_custom_call.1} parent=1 // pred_region
      %88 = dma.done [#allocation3], 256
    $region41: #{tpu_custom_call.1} parent=1 // pred_fallthru
      _
    // Predicated region
    $region42: #{tpu_custom_call.1} parent=1 // pred_check
      _
    $region43: #{tpu_custom_call.1} parent=1 // pred_check_branch
      %90 = sbr.rel (0) target = $region45
    $region44: #{tpu_custom_call.1} parent=1 // pred_region
      %91 = dma.done [#allocation6], 768
    $region45: #{tpu_custom_call.1} parent=1 // pred_fallthru
      _
    // Predicated region
    $region46: #{tpu_custom_call.1} parent=1 // pred_check
      _
    $region47: #{tpu_custom_call.1} parent=1 // pred_check_branch
      %93 = sbr.rel (0) target = $region49
    $region48: #{tpu_custom_call.1} parent=1 // pred_region
      %94 = dma.done [#allocation6], 2048
    $region49: #{tpu_custom_call.1} parent=1 // pred_fallthru
      _
    // Predicated region
    $region50: #{tpu_custom_call.1} parent=1 // pred_check
      _
    $region51: #{tpu_custom_call.1} parent=1 // pred_check_branch
      %96 = sbr.rel (0) target = $region53
    $region52: #{tpu_custom_call.1} parent=1 // pred_region
      %97 = dma.done [#allocation9], 2048
    $region53: #{tpu_custom_call.1} parent=1 // pred_fallthru
      _
    // Predicated region
    $region54: #{tpu_custom_call.1} parent=1 // pred_check
      _
    $region55: #{tpu_custom_call.1} parent=1 // pred_check_branch
      %99 = sbr.rel (0) target = $region57
    $region56: #{tpu_custom_call.1} parent=1 // pred_region
      %100 = dma.done [#allocation9], 2048
    $region57: #{tpu_custom_call.1} parent=1 // pred_fallthru
      _
    %v101 = vld [vmem:[#allocation2] sm:$0xff]
    %v102 = vld [vmem:[#allocation2 + $0x8] sm:$0xff]
    %v103 = vld [vmem:[#allocation5] sm:$0xff]
    %v104 = vld [vmem:[#allocation5 + $0x8] sm:$0xff]
    %v105 = vld [vmem:[#allocation5 + $0x10] sm:$0xff]
    %v106 = vld [vmem:[#allocation5 + $0x18] sm:$0xff]
    %v107 = vld [vmem:[#allocation5 + $0x20] sm:$0xff]
    %v108 = vld [vmem:[#allocation5 + $0x28] sm:$0xff]
    %v109 = vld [vmem:[%s2] sm:$0x3]
    %v111 = vlaneseq
    %v112 = vshrl.u32 %v111, 7
    %v113 = vsub.s32 0, %v112
    %v114 = vrot.slane %v109, %v113
    %v115 = vlaneseq
    %v116 = vshrl.u32 %v115, 7
    %v117 = vsub.s32 1, %v116
    %v118 = vrot.slane %v109, %v117
    %vm121 = vcmask 195584
    %v123 = vsel %vm121, %v101, 0
    %v126 = vsel %vm121, %v102, 0
    %128 = vmatprep.subr.mxu0 %v104
    %129 = vmatpush1.msra.mxu0 %v103
    %130 = vmatprep.subr.mxu0 %v106
    %131 = vmatpush1.msra.mxu0 %v105
    %132 = vmatprep.subr.mxu0 %v108
    %133 = vmatpush1.msra.mxu0 %v107
    %134 = vmatprep.subr.mxu0 0.0
    %135 = vmatpush1.msra.mxu0 0.0
    %136 = vmatprep.subr.mxu0 0.0
    %137 = vmatpush1.msra.mxu0 0.0
    %138 = vmatprep.subr.mxu0 0.0
    %139 = vmatpush1.msra.mxu0 0.0
    %140 = vmatprep.subr.mxu0 0.0
    %141 = vmatpush1.msra.mxu0 0.0
    %142 = vmatprep.subr.mxu0 0.0
    %143 = vmatpush1.msra.mxu0 0.0
    %144 = vmatprep.subr.mxu0 0.0
    %145 = vmatpush1.msra.mxu0 0.0
    %146 = vmatprep.subr.mxu0 0.0
    %147 = vmatpush1.msra.mxu0 0.0
    %148 = vmatprep.subr.mxu0 0.0
    %149 = vmatpush1.msra.mxu0 0.0
    %150 = vmatprep.subr.mxu0 0.0
    %151 = vmatpush1.msra.mxu0 0.0
    %152 = vmatprep.subr.mxu0 0.0
    %153 = vmatpush1.msra.mxu0 0.0
    %154 = vmatprep.subr.mxu0 0.0
    %155 = vmatpush1.msra.mxu0 0.0
    %156 = vmatprep.subr.mxu0 0.0
    %157 = vmatpush1.msra.mxu0 0.0
    %158 = vmatprep.subr.mxu0 0.0
    %159 = vmatpush1.msra.mxu0 0.0
    %160 = vmatprep.subr.mxu0 0.0
    %161 = vmatpush1.msra.mxu0 0.0
    %162 = vmatprep.subr.mxu0 0.0
    %163 = vmatpush1.msra.mxu0 0.0
    %164 = vmatprep.subr.mxu0 0.0
    %165 = vmatpush1.msra.mxu0 0.0
    %166 = vmatprep.subr.mxu0 0.0
    %167 = vmatpush1.msra.mxu0 0.0
    %168 = vmatprep.subr.mxu0 0.0
    %169 = vmatpush1.msra.mxu0 0.0
    %170 = vmatprep.subr.mxu0 0.0
    %171 = vmatpush1.msra.mxu0 0.0
    %172 = vmatprep.subr.mxu0 0.0
    %173 = vmatpush1.msra.mxu0 0.0
    %174 = vmatprep.subr.mxu0 0.0
    %175 = vmatpush1.msra.mxu0 0.0
    %176 = vmatprep.subr.mxu0 0.0
    %177 = vmatpush1.msra.mxu0 0.0
    %178 = vmatprep.subr.mxu0 0.0
    %179 = vmatpush1.msra.mxu0 0.0
    %180 = vmatprep.subr.mxu0 0.0
    %181 = vmatpush1.msra.mxu0 0.0
    %182 = vmatprep.subr.mxu0 0.0
    %183 = vmatpush1.msra.mxu0 0.0
    %184 = vmatprep.subr.mxu0 0.0
    %185 = vmatpush1.msra.mxu0 0.0
    %186 = vmatprep.subr.mxu0 0.0
    %187 = vmatpush1.msra.mxu0 0.0
    %188 = vmatprep.subr.mxu0 0.0
    %189 = vmatpush1.msra.mxu0 0.0
    %190 = vmatprep.subr.mxu0 0.0
    %191 = vmatpush1.msra.mxu0 0.0
    %192 = vmatprep.mubr.f32.mxu0 0.0
    %193 = vmatmul.mubr.f32.gmra.mrb[0].mxu0 %v123
    %v194 = vpop.f32.mrb[0].mxu0
    %v195 = vadd.f32 %v114, %v194
    %v196 = vpop.f32.mrb[0].mxu0
    %v197 = vadd.f32 %v118, %v196
    %198 = vmatprep.mubr.f32.mxu0 0.0
    %199 = vmatmul.mubr.f32.gmra.mrb[0].mxu0 %v126
    %v200 = vpop.f32.mrb[0].mxu0
    %v201 = vadd.f32 %v114, %v200
    %v202 = vpop.f32.mrb[0].mxu0
    %v203 = vadd.f32 %v118, %v202
    %204 = vdwg.mxu0
    %v205 = vmax.f32 %v195, 0.0
    %v206 = vmax.f32 %v201, 0.0
    %v207 = vld [vmem:[#allocation7] sm:$0xff]
    %v208 = vld [vmem:[#allocation7 + $0x8] sm:$0xff]
    %v209 = vld [vmem:[#allocation7 + $0x10] sm:$0xff]
    %v210 = vld [vmem:[#allocation7 + $0x18] sm:$0xff]
    %v211 = vld [vmem:[#allocation7 + $0x20] sm:$0xff]
    %v212 = vld [vmem:[#allocation7 + $0x28] sm:$0xff]
    %v213 = vld [vmem:[#allocation7 + $0x30] sm:$0xff]
    %v214 = vld [vmem:[#allocation7 + $0x38] sm:$0xff]
    %v215 = vld [vmem:[#allocation7 + $0x40] sm:$0xff]
    %v216 = vld [vmem:[#allocation7 + $0x48] sm:$0xff]
    %v217 = vld [vmem:[#allocation7 + $0x50] sm:$0xff]
    %v218 = vld [vmem:[#allocation7 + $0x58] sm:$0xff]
    %v219 = vld [vmem:[#allocation7 + $0x60] sm:$0xff]
    %v220 = vld [vmem:[#allocation7 + $0x68] sm:$0xff]
    %v221 = vld [vmem:[#allocation7 + $0x70] sm:$0xff]
    %v222 = vld [vmem:[#allocation7 + $0x78] sm:$0xff]
    %v223 = vld [vmem:[%s4] sm:$0x1]
    %v225 = vlaneseq
    %v226 = vshrl.u32 %v225, 7
    %v227 = vsub.s32 0, %v226
    %v228 = vrot.slane %v223, %v227
    %230 = vmatprep.subr.mxu0 0.0
    %231 = vmatpush1.msra.mxu0 %v207
    %232 = vmatprep.subr.mxu0 0.0
    %233 = vmatpush1.msra.mxu0 %v208
    %234 = vmatprep.subr.mxu0 0.0
    %235 = vmatpush1.msra.mxu0 %v209
    %236 = vmatprep.subr.mxu0 0.0
    %237 = vmatpush1.msra.mxu0 %v210
    %238 = vmatprep.subr.mxu0 0.0
    %239 = vmatpush1.msra.mxu0 %v211
    %240 = vmatprep.subr.mxu0 0.0
    %241 = vmatpush1.msra.mxu0 %v212
    %242 = vmatprep.subr.mxu0 0.0
    %243 = vmatpush1.msra.mxu0 %v213
    %244 = vmatprep.subr.mxu0 0.0
    %245 = vmatpush1.msra.mxu0 %v214
    %246 = vmatprep.subr.mxu0 0.0
    %247 = vmatpush1.msra.mxu0 %v215
    %248 = vmatprep.subr.mxu0 0.0
    %249 = vmatpush1.msra.mxu0 %v216
    %250 = vmatprep.subr.mxu0 0.0
    %251 = vmatpush1.msra.mxu0 %v217
    %252 = vmatprep.subr.mxu0 0.0
    %253 = vmatpush1.msra.mxu0 %v218
    %254 = vmatprep.subr.mxu0 0.0
    %255 = vmatpush1.msra.mxu0 %v219
    %256 = vmatprep.subr.mxu0 0.0
    %257 = vmatpush1.msra.mxu0 %v220
    %258 = vmatprep.subr.mxu0 0.0
    %259 = vmatpush1.msra.mxu0 %v221
    %260 = vmatprep.subr.mxu0 0.0
    %261 = vmatpush1.msra.mxu0 %v222
    %262 = vmatprep.subr.mxu0 0.0
    %263 = vmatpush1.msra.mxu0 0.0
    %264 = vmatprep.subr.mxu0 0.0
    %265 = vmatpush1.msra.mxu0 0.0
    %266 = vmatprep.subr.mxu0 0.0
    %267 = vmatpush1.msra.mxu0 0.0
    %268 = vmatprep.subr.mxu0 0.0
    %269 = vmatpush1.msra.mxu0 0.0
    %270 = vmatprep.subr.mxu0 0.0
    %271 = vmatpush1.msra.mxu0 0.0
    %272 = vmatprep.subr.mxu0 0.0
    %273 = vmatpush1.msra.mxu0 0.0
    %274 = vmatprep.subr.mxu0 0.0
    %275 = vmatpush1.msra.mxu0 0.0
    %276 = vmatprep.subr.mxu0 0.0
    %277 = vmatpush1.msra.mxu0 0.0
    %278 = vmatprep.subr.mxu0 0.0
    %279 = vmatpush1.msra.mxu0 0.0
    %280 = vmatprep.subr.mxu0 0.0
    %281 = vmatpush1.msra.mxu0 0.0
    %282 = vmatprep.subr.mxu0 0.0
    %283 = vmatpush1.msra.mxu0 0.0
    %284 = vmatprep.subr.mxu0 0.0
    %285 = vmatpush1.msra.mxu0 0.0
    %286 = vmatprep.subr.mxu0 0.0
    %287 = vmatpush1.msra.mxu0 0.0
    %288 = vmatprep.subr.mxu0 0.0
    %289 = vmatpush1.msra.mxu0 0.0
    %290 = vmatprep.subr.mxu0 0.0
    %291 = vmatpush1.msra.mxu0 0.0
    %292 = vmatprep.subr.mxu0 0.0
    %293 = vmatpush1.msra.mxu0 0.0
    %294 = vmatprep.mubr.f32.mxu0 0.0
    %295 = vmatmul.mubr.f32.gmra.mrb[0].mxu0 %v205
    %v296 = vpop.f32.mrb[0].mxu0
    %v297 = vadd.f32 %v228, %v296
    %v298 = vpop.f32.mrb[0].mxu0
    %299 = vmatprep.mubr.f32.mxu0 0.0
    %300 = vmatmul.mubr.f32.gmra.mrb[0].mxu0 %v206
    %v301 = vpop.f32.mrb[0].mxu0
    %v302 = vadd.f32 %v228, %v301
    %v303 = vpop.f32.mrb[0].mxu0
    %304 = vdwg.mxu0
    %v305 = vadd.f32 %v297, %v197
    %v306 = vadd.f32 %v302, %v203
    %v307 = vmax.f32 %v305, 0.0
    %v308 = vmax.f32 %v306, 0.0
    %v309 = vld [vmem:[#allocation8] sm:$0xff]
    %v310 = vld [vmem:[#allocation8 + $0x8] sm:$0xff]
    %v311 = vld [vmem:[#allocation8 + $0x10] sm:$0xff]
    %v312 = vld [vmem:[#allocation8 + $0x18] sm:$0xff]
    %v313 = vld [vmem:[#allocation8 + $0x20] sm:$0xff]
    %v314 = vld [vmem:[#allocation8 + $0x28] sm:$0xff]
    %v315 = vld [vmem:[#allocation8 + $0x30] sm:$0xff]
    %v316 = vld [vmem:[#allocation8 + $0x38] sm:$0xff]
    %v317 = vld [vmem:[#allocation8 + $0x40] sm:$0xff]
    %v318 = vld [vmem:[#allocation8 + $0x48] sm:$0xff]
    %v319 = vld [vmem:[#allocation8 + $0x50] sm:$0xff]
    %v320 = vld [vmem:[#allocation8 + $0x58] sm:$0xff]
    %v321 = vld [vmem:[#allocation8 + $0x60] sm:$0xff]
    %v322 = vld [vmem:[#allocation8 + $0x68] sm:$0xff]
    %v323 = vld [vmem:[#allocation8 + $0x70] sm:$0xff]
    %v324 = vld [vmem:[#allocation8 + $0x78] sm:$0xff]
    %v325 = vld [vmem:[%s6] sm:$0x1]
    %v327 = vlaneseq
    %v328 = vshrl.u32 %v327, 7
    %v329 = vsub.s32 0, %v328
    %v330 = vrot.slane %v325, %v329
    %332 = vmatprep.subr.mxu0 0.0
    %333 = vmatpush1.msra.mxu0 %v309
    %334 = vmatprep.subr.mxu0 0.0
    %335 = vmatpush1.msra.mxu0 %v310
    %336 = vmatprep.subr.mxu0 0.0
    %337 = vmatpush1.msra.mxu0 %v311
    %338 = vmatprep.subr.mxu0 0.0
    %339 = vmatpush1.msra.mxu0 %v312
    %340 = vmatprep.subr.mxu0 0.0
    %341 = vmatpush1.msra.mxu0 %v313
    %342 = vmatprep.subr.mxu0 0.0
    %343 = vmatpush1.msra.mxu0 %v314
    %344 = vmatprep.subr.mxu0 0.0
    %345 = vmatpush1.msra.mxu0 %v315
    %346 = vmatprep.subr.mxu0 0.0
    %347 = vmatpush1.msra.mxu0 %v316
    %348 = vmatprep.subr.mxu0 0.0
    %349 = vmatpush1.msra.mxu0 %v317
    %350 = vmatprep.subr.mxu0 0.0
    %351 = vmatpush1.msra.mxu0 %v318
    %352 = vmatprep.subr.mxu0 0.0
    %353 = vmatpush1.msra.mxu0 %v319
    %354 = vmatprep.subr.mxu0 0.0
    %355 = vmatpush1.msra.mxu0 %v320
    %356 = vmatprep.subr.mxu0 0.0
    %357 = vmatpush1.msra.mxu0 %v321
    %358 = vmatprep.subr.mxu0 0.0
    %359 = vmatpush1.msra.mxu0 %v322
    %360 = vmatprep.subr.mxu0 0.0
    %361 = vmatpush1.msra.mxu0 %v323
    %362 = vmatprep.subr.mxu0 0.0
    %363 = vmatpush1.msra.mxu0 %v324
    %364 = vmatprep.subr.mxu0 0.0
    %365 = vmatpush1.msra.mxu0 0.0
    %366 = vmatprep.subr.mxu0 0.0
    %367 = vmatpush1.msra.mxu0 0.0
    %368 = vmatprep.subr.mxu0 0.0
    %369 = vmatpush1.msra.mxu0 0.0
    %370 = vmatprep.subr.mxu0 0.0
    %371 = vmatpush1.msra.mxu0 0.0
    %372 = vmatprep.subr.mxu0 0.0
    %373 = vmatpush1.msra.mxu0 0.0
    %374 = vmatprep.subr.mxu0 0.0
    %375 = vmatpush1.msra.mxu0 0.0
    %376 = vmatprep.subr.mxu0 0.0
    %377 = vmatpush1.msra.mxu0 0.0
    %378 = vmatprep.subr.mxu0 0.0
    %379 = vmatpush1.msra.mxu0 0.0
    %380 = vmatprep.subr.mxu0 0.0
    %381 = vmatpush1.msra.mxu0 0.0
    %382 = vmatprep.subr.mxu0 0.0
    %383 = vmatpush1.msra.mxu0 0.0
    %384 = vmatprep.subr.mxu0 0.0
    %385 = vmatpush1.msra.mxu0 0.0
    %386 = vmatprep.subr.mxu0 0.0
    %387 = vmatpush1.msra.mxu0 0.0
    %388 = vmatprep.subr.mxu0 0.0
    %389 = vmatpush1.msra.mxu0 0.0
    %390 = vmatprep.subr.mxu0 0.0
    %391 = vmatpush1.msra.mxu0 0.0
    %392 = vmatprep.subr.mxu0 0.0
    %393 = vmatpush1.msra.mxu0 0.0
    %394 = vmatprep.subr.mxu0 0.0
    %395 = vmatpush1.msra.mxu0 0.0
    %396 = vmatprep.mubr.f32.mxu0 0.0
    %397 = vmatmul.mubr.f32.gmra.mrb[0].mxu0 %v307
    %v398 = vpop.f32.mrb[0].mxu0
    %v399 = vadd.f32 %v330, %v398
    %v400 = vpop.f32.mrb[0].mxu0
    %401 = vmatprep.mubr.f32.mxu0 0.0
    %402 = vmatmul.mubr.f32.gmra.mrb[0].mxu0 %v308
    %v403 = vpop.f32.mrb[0].mxu0
    %v404 = vadd.f32 %v330, %v403
    %v405 = vpop.f32.mrb[0].mxu0
    %406 = vdwg.mxu0
    %v407 = vmax.f32 %v399, 0.0
    %v408 = vmax.f32 %v404, 0.0
    %v409 = vld [vmem:[#allocation10] sm:$0xff]
    %v410 = vld [vmem:[#allocation10 + $0x8] sm:$0xff]
    %v411 = vld [vmem:[#allocation10 + $0x10] sm:$0xff]
    %v412 = vld [vmem:[#allocation10 + $0x18] sm:$0xff]
    %v413 = vld [vmem:[#allocation10 + $0x20] sm:$0xff]
    %v414 = vld [vmem:[#allocation10 + $0x28] sm:$0xff]
    %v415 = vld [vmem:[#allocation10 + $0x30] sm:$0xff]
    %v416 = vld [vmem:[#allocation10 + $0x38] sm:$0xff]
    %v417 = vld [vmem:[#allocation10 + $0x40] sm:$0xff]
    %v418 = vld [vmem:[#allocation10 + $0x48] sm:$0xff]
    %v419 = vld [vmem:[#allocation10 + $0x50] sm:$0xff]
    %v420 = vld [vmem:[#allocation10 + $0x58] sm:$0xff]
    %v421 = vld [vmem:[#allocation10 + $0x60] sm:$0xff]
    %v422 = vld [vmem:[#allocation10 + $0x68] sm:$0xff]
    %v423 = vld [vmem:[#allocation10 + $0x70] sm:$0xff]
    %v424 = vld [vmem:[#allocation10 + $0x78] sm:$0xff]
    %v425 = vld [vmem:[%s8] sm:$0x1]
    %v427 = vlaneseq
    %v428 = vshrl.u32 %v427, 7
    %v429 = vsub.s32 0, %v428
    %v430 = vrot.slane %v425, %v429
    %432 = vmatprep.subr.mxu0 0.0
    %433 = vmatpush1.msra.mxu0 %v409
    %434 = vmatprep.subr.mxu0 0.0
    %435 = vmatpush1.msra.mxu0 %v410
    %436 = vmatprep.subr.mxu0 0.0
    %437 = vmatpush1.msra.mxu0 %v411
    %438 = vmatprep.subr.mxu0 0.0
    %439 = vmatpush1.msra.mxu0 %v412
    %440 = vmatprep.subr.mxu0 0.0
    %441 = vmatpush1.msra.mxu0 %v413
    %442 = vmatprep.subr.mxu0 0.0
    %443 = vmatpush1.msra.mxu0 %v414
    %444 = vmatprep.subr.mxu0 0.0
    %445 = vmatpush1.msra.mxu0 %v415
    %446 = vmatprep.subr.mxu0 0.0
    %447 = vmatpush1.msra.mxu0 %v416
    %448 = vmatprep.subr.mxu0 0.0
    %449 = vmatpush1.msra.mxu0 %v417
    %450 = vmatprep.subr.mxu0 0.0
    %451 = vmatpush1.msra.mxu0 %v418
    %452 = vmatprep.subr.mxu0 0.0
    %453 = vmatpush1.msra.mxu0 %v419
    %454 = vmatprep.subr.mxu0 0.0
    %455 = vmatpush1.msra.mxu0 %v420
    %456 = vmatprep.subr.mxu0 0.0
    %457 = vmatpush1.msra.mxu0 %v421
    %458 = vmatprep.subr.mxu0 0.0
    %459 = vmatpush1.msra.mxu0 %v422
    %460 = vmatprep.subr.mxu0 0.0
    %461 = vmatpush1.msra.mxu0 %v423
    %462 = vmatprep.subr.mxu0 0.0
    %463 = vmatpush1.msra.mxu0 %v424
    %464 = vmatprep.subr.mxu0 0.0
    %465 = vmatpush1.msra.mxu0 0.0
    %466 = vmatprep.subr.mxu0 0.0
    %467 = vmatpush1.msra.mxu0 0.0
    %468 = vmatprep.subr.mxu0 0.0
    %469 = vmatpush1.msra.mxu0 0.0
    %470 = vmatprep.subr.mxu0 0.0
    %471 = vmatpush1.msra.mxu0 0.0
    %472 = vmatprep.subr.mxu0 0.0
    %473 = vmatpush1.msra.mxu0 0.0
    %474 = vmatprep.subr.mxu0 0.0
    %475 = vmatpush1.msra.mxu0 0.0
    %476 = vmatprep.subr.mxu0 0.0
    %477 = vmatpush1.msra.mxu0 0.0
    %478 = vmatprep.subr.mxu0 0.0
    %479 = vmatpush1.msra.mxu0 0.0
    %480 = vmatprep.subr.mxu0 0.0
    %481 = vmatpush1.msra.mxu0 0.0
    %482 = vmatprep.subr.mxu0 0.0
    %483 = vmatpush1.msra.mxu0 0.0
    %484 = vmatprep.subr.mxu0 0.0
    %485 = vmatpush1.msra.mxu0 0.0
    %486 = vmatprep.subr.mxu0 0.0
    %487 = vmatpush1.msra.mxu0 0.0
    %488 = vmatprep.subr.mxu0 0.0
    %489 = vmatpush1.msra.mxu0 0.0
    %490 = vmatprep.subr.mxu0 0.0
    %491 = vmatpush1.msra.mxu0 0.0
    %492 = vmatprep.subr.mxu0 0.0
    %493 = vmatpush1.msra.mxu0 0.0
    %494 = vmatprep.subr.mxu0 0.0
    %495 = vmatpush1.msra.mxu0 0.0
    %496 = vmatprep.mubr.f32.mxu0 0.0
    %497 = vmatmul.mubr.f32.gmra.mrb[0].mxu0 %v407
    %v498 = vpop.f32.mrb[0].mxu0
    %v499 = vadd.f32 %v430, %v498
    %v500 = vpop.f32.mrb[0].mxu0
    %501 = vmatprep.mubr.f32.mxu0 0.0
    %502 = vmatmul.mubr.f32.gmra.mrb[0].mxu0 %v408
    %v503 = vpop.f32.mrb[0].mxu0
    %v504 = vadd.f32 %v430, %v503
    %v505 = vpop.f32.mrb[0].mxu0
    %506 = vdwg.mxu0
    %507 = vst [vmem:[#allocation11] sm:$0xff] %v499
    %508 = vst [vmem:[#allocation11 + $0x8] sm:$0xff] %v504
    // Predicated region
    $region58: #{tpu_custom_call.1} parent=1 // pred_check
      _
    $region59: #{tpu_custom_call.1} parent=1 // pred_check_branch
      %510 = sbr.rel (0) target = $region61
    $region60: #{tpu_custom_call.1} parent=1 // pred_region
      %s512 = ssub.s32 256, 256
      %513 = vsyncadd [#allocation4], %s512
      %s514 = sshll.u32 [#allocation11], 4
      %s515 = int_to_ptr.vmem [resolvable:$true] %s514
      %520 = dma.vmem_to_hbm [thread:$0]  %s515, 256, %s9, [#allocation4], 128, 128, 8
    $region61: #{tpu_custom_call.1} parent=1 // pred_fallthru
      _
    // Predicated region
    $region62: #{tpu_custom_call.1} parent=1 // pred_check
      _
    $region63: #{tpu_custom_call.1} parent=1 // pred_check_branch
      %522 = sbr.rel (0) target = $region65
    $region64: #{tpu_custom_call.1} parent=1 // pred_region
      %523 = dma.done [#allocation4], 256
    $region65: #{tpu_custom_call.1} parent=1 // pred_fallthru
      _
    %524 = vsyncpa [#allocation3], 1
    %525 = vsyncpa [#allocation6], 1
    %526 = vsyncpa [#allocation9], 1
    %527 = vsyncpa [#allocation4], 1

</llo_original>
